<compile_context>
chip_gen: v7x
topology: tpu7x:2x2x1
jax: 0.10.0
libtpu: 0.0.40
codegen_flags: <defaults>
</compile_context>

<pallas_src>
import jax
import jax.numpy as jnp
from jax.experimental import pallas as pl
from jax.experimental.pallas import tpu as pltpu

_LANES = 128
_TARGET_BLOCK_BYTES = 4 * 1024 * 1024     # ~4 MiB input block (sweet spot v5e/v6e/v7x)
_VMEM_LIMIT_BYTES = 40 * 1024 * 1024      # > 16 MiB needed, < 64 MiB v7x physical


def _sublane_multiple(dtype) -> int:
    # f32 native tile is (8, 128); sub-32-bit dtypes pack along sublanes.
    itemsize = jnp.dtype(dtype).itemsize
    return 8 * max(1, 4 // itemsize)


def _linreg_kernel(w_ref, b_ref, x_ref, o_ref):
    # w_ref / b_ref: f32[1] scalars in SMEM.  x_ref / o_ref: (tile_rows, 128) VMEM tiles.
    w = w_ref[0]
    b = b_ref[0]
    y = x_ref[...].astype(jnp.float32) * w + b
    o_ref[...] = y.astype(o_ref.dtype)


def linear_regression_v2(x, weights, bias):
    """y = weights * x + bias, elementwise over x (weights/bias are shape-(1,))."""
    orig_shape = x.shape
    dtype = x.dtype
    n = x.size

    if n == 0:
        # Degenerate edge case: plain XLA (no kernel launch needed).
        return (weights.astype(dtype) * x + bias.astype(dtype)).astype(dtype)

    w = jnp.asarray(weights, jnp.float32).reshape(-1)[:1]
    b = jnp.asarray(bias, jnp.float32).reshape(-1)[:1]

    x_flat = x.reshape(-1)
    lane_aligned = (n % _LANES) == 0
    if lane_aligned:
        # Free bitcast to a lane-dense slab: no pad pass, no output slice pass.
        x2d = x_flat.reshape(n // _LANES, _LANES)
        # Operand is (a view of) the caller's buffer; aliasing it to the output
        # would force XLA to insert a defensive copy -> intentionally no alias.
        io_alias = {}
    else:
        # Ragged tail: pad only to the next full lane row (<= 127 extra elements).
        pad = _LANES - (n % _LANES)
        x2d = jnp.pad(x_flat, (0, pad)).reshape(-1, _LANES)
        # The padded temp is an XLA intermediate -> donate it as the output slab.
        io_alias = {2: 0}

    rows = x2d.shape[0]
    itemsize = jnp.dtype(dtype).itemsize
    sub = _sublane_multiple(dtype)
    max_tile_rows = max(sub, (_TARGET_BLOCK_BYTES // (_LANES * itemsize)) // sub * sub)
    if rows <= max_tile_rows:
        tile_rows = rows              # block == full array dims (always legal)
    else:
        tile_rows = max_tile_rows     # multiple of the sublane tiling
    grid = (pl.cdiv(rows, tile_rows),)  # ragged last block handled by Pallas

    bytes_accessed = 2 * rows * _LANES * itemsize + 2 * 4  # x read + y write + scalars
    cost = pl.CostEstimate(
        flops=2 * rows * _LANES, transcendentals=0, bytes_accessed=bytes_accessed
    )

    out2d = pl.pallas_call(
        _linreg_kernel,
        out_shape=jax.ShapeDtypeStruct((rows, _LANES), dtype),
        grid=grid,
        in_specs=[
            pl.BlockSpec(memory_space=pltpu.MemorySpace.SMEM),   # weights f32[1]
            pl.BlockSpec(memory_space=pltpu.MemorySpace.SMEM),   # bias    f32[1]
            pl.BlockSpec((tile_rows, _LANES), lambda i: (i, 0)),  # x tile  (VMEM)
        ],
        out_specs=pl.BlockSpec((tile_rows, _LANES), lambda i: (i, 0)),
        input_output_aliases=io_alias,
        cost_estimate=cost,
        compiler_params=pltpu.CompilerParams(
            dimension_semantics=("parallel",),     # lets v7x shard blocks over 2 TCs
            vmem_limit_bytes=_VMEM_LIMIT_BYTES,
        ),
    )(w, b, x2d)

    if lane_aligned:
        return out2d.reshape(orig_shape)           # free bitcast back
    return out2d.reshape(-1)[:n].reshape(orig_shape)


if __name__ == "__main__":
    # Deterministic parameter init (mirrors torch.randn(1) parameter shapes).
    key = jax.random.PRNGKey(0)
    k_w, k_b, k_x = jax.random.split(key, 3)
    weights = jax.random.normal(k_w, (1,), dtype=jnp.float32)
    bias = jax.random.normal(k_b, (1,), dtype=jnp.float32)

    fwd = jax.jit(linear_regression_v2)

    # 1) Input exactly as in the reference script: arange(0, 1, 0.01).unsqueeze(1) -> [100, 1]
    #    (ragged path: n=100 is not a multiple of 128).
    x = jnp.arange(0.0, 1.0, 0.01, dtype=jnp.float32)[:, None]
    y = jax.block_until_ready(fwd(x, weights, bias))
    y_ref = weights * x + bias
    assert y.shape == x.shape and y.dtype == x.dtype
    assert jnp.allclose(y, y_ref, rtol=1e-6, atol=1e-6)

    # 2) Lane-aligned zero-copy fast path (n % 128 == 0).
    x2 = jax.random.normal(k_x, (8, 128), dtype=jnp.float32)
    y2 = jax.block_until_ready(fwd(x2, weights, bias))
    y2_ref = weights * x2 + bias
    assert y2.shape == x2.shape and y2.dtype == x2.dtype
    assert jnp.allclose(y2, y2_ref, rtol=1e-6, atol=1e-6)

    print("KERNEL_OK")
</pallas_src>

<mosaic_0001>
module attributes {stable_mosaic.version = 11 : i64} {
  func.func @_linreg_kernel(%arg0: i32, %arg1: memref<1xf32, #tpu.memory_space<smem>>, %arg2: memref<1xf32, #tpu.memory_space<smem>>, %arg3: memref<1x128xf32, #tpu.memory_space<vmem>>, %arg4: memref<1x128xf32, #tpu.memory_space<vmem>>) attributes {dimension_semantics = [#tpu.dimension_semantics<parallel>], iteration_bounds = array<i64: 1>, scalar_prefetch = 0 : i64, scratch_operands = 0 : i64, tpu.core_type = #tpu.core_type<tc>, window_params = [{transform_indices = @transform_0, window_bounds = array<i64: 1>}, {transform_indices = @transform_1, window_bounds = array<i64: 1>}, {transform_indices = @transform_2, window_bounds = array<i64: 1, 128>}, {transform_indices = @transform_3, window_bounds = array<i64: 1, 128>}]} {
    %c0 = arith.constant 0 : index
    %0 = memref.load %arg1[%c0] : memref<1xf32, #tpu.memory_space<smem>>
    %c0_0 = arith.constant 0 : index
    %1 = memref.load %arg2[%c0_0] : memref<1xf32, #tpu.memory_space<smem>>
    %c0_1 = arith.constant 0 : index
    %c0_2 = arith.constant 0 : index
    %2 = vector.load %arg3[%c0_1, %c0_2] : memref<1x128xf32, #tpu.memory_space<vmem>>, vector<1x128xf32>
    %3 = vector.broadcast %0 : f32 to vector<1x128xf32>
    %4 = arith.mulf %2, %3 : vector<1x128xf32>
    %5 = vector.broadcast %1 : f32 to vector<1x128xf32>
    %6 = arith.addf %4, %5 : vector<1x128xf32>
    %c0_3 = arith.constant 0 : index
    %c0_4 = arith.constant 0 : index
    %7 = vector.load %arg4[%c0_3, %c0_4] : memref<1x128xf32, #tpu.memory_space<vmem>>, vector<1x128xf32>
    tpu.vector_store %arg4[%c0_3, %c0_4], %6 {strides = array<i32>} : memref<1x128xf32, #tpu.memory_space<vmem>>, vector<1x128xf32>,
    return
  }
  func.func @transform_0(%arg0: i32) -> i32 {
    %c0_i32 = arith.constant 0 : i32
    %c0_i32_0 = arith.constant 0 : i32
    return %c0_i32 : i32
  }
  func.func @transform_1(%arg0: i32) -> i32 {
    %c0_i32 = arith.constant 0 : i32
    %c0_i32_0 = arith.constant 0 : i32
    return %c0_i32 : i32
  }
  func.func @transform_2(%arg0: i32) -> (i32, i32) {
    %c0_i32 = arith.constant 0 : i32
    %c0_i32_0 = arith.constant 0 : i32
    return %arg0, %c0_i32 : i32, i32
  }
  func.func @transform_3(%arg0: i32) -> (i32, i32) {
    %c0_i32 = arith.constant 0 : i32
    %c0_i32_0 = arith.constant 0 : i32
    return %arg0, %c0_i32 : i32, i32
  }
}

</mosaic_0001>

<llo_original>
// kernel: linear_regression_v2.1
$region0: #{linear_regression_v2.1}
  #allocation0 [shape = 'u32[]', space=smem, size = 0x4, offset = 0x4, fixed_abs, tag = 'smem constant byte address 0x4 - core index']
  #allocation1 [shape = 'u32[144,128]{1,0:T(1,128)}', space=vmem, size = 0x12000, scoped, tag = 'internal scratch']
  #allocation2 [shape = 'f32[1]{0:T(128)S(6)}', space=smem, size = 0x200, scoped, tag = 'scoped memory for linear_regression_v2.1']
  #allocation3 [shape = 'f32[1]{0:T(128)S(6)}', space=smem, size = 0x200, scoped, tag = 'scoped memory for linear_regression_v2.1']
  %s0 = inlined_call_operand.<no memory space> [shape: f32[1], index: 0, kind: input, shape index: {}]
  %s1 = inlined_call_operand.<no memory space> [shape: f32[1], index: 1, kind: input, shape index: {}]
  %s2 = inlined_call_operand.vmem [shape: f32[1,128], index: 2, kind: input, shape index: {}, may-alias: {2,3}]
  %s3 = inlined_call_operand.vmem [shape: f32[1,128], index: 3, kind: output, shape index: {}, may-alias: {2,3}]
  %s4 = sld [smem:[#allocation0]]
  $region22: #{linear_regression_v2.1} parent=0
    _
  %s6 = ssub.s32 1, %s4
  %s7 = scalar_select 0, %s6, %s4
  %8 = sst [smem:[#allocation2]] %s0
  %9 = sst [smem:[#allocation3]] %s1
  // Predicated region
  $region2: #{linear_regression_v2.1} parent=0 // pred_check
    _
  $region3: #{linear_regression_v2.1} parent=0 // pred_check_branch
    %11 = sbr.rel (0) target = $region5
  $region4: #{linear_regression_v2.1} parent=0 // pred_region
    _
  $region5: #{linear_regression_v2.1} parent=0 // pred_fallthru
    _
  // Predicated region
  $region6: #{linear_regression_v2.1} parent=0 // pred_check
    _
  $region7: #{linear_regression_v2.1} parent=0 // pred_check_branch
    %13 = sbr.rel (0) target = $region9
  $region8: #{linear_regression_v2.1} parent=0 // pred_region
    _
  $region9: #{linear_regression_v2.1} parent=0 // pred_fallthru
    _
  // Predicated region
  $region10: #{linear_regression_v2.1} parent=0 // pred_check
    _
  $region11: #{linear_regression_v2.1} parent=0 // pred_check_branch
    %15 = sbr.rel (0) target = $region13
  $region12: #{linear_regression_v2.1} parent=0 // pred_region
    _
  $region13: #{linear_regression_v2.1} parent=0 // pred_fallthru
    _
  %s16 = sld [smem:[#allocation2]]
  %s17 = sld [smem:[#allocation3]]
  %v18 = vld [vmem:[%s2] sm:$0x1]
  %v19 = vstv %s16
  %v20 = vmul.f32 %v18, %v19
  %v21 = vstv %s17
  %v22 = vadd.f32 %v20, %v21
  %23 = vst [vmem:[%s3] sm:$0x1] %v22
  // Predicated region
  $region14: #{linear_regression_v2.1} parent=0 // pred_check
    _
  $region15: #{linear_regression_v2.1} parent=0 // pred_check_branch
    %25 = sbr.rel (0) target = $region17
  $region16: #{linear_regression_v2.1} parent=0 // pred_region
    _
  $region17: #{linear_regression_v2.1} parent=0 // pred_fallthru
    _
  // Predicated region
  $region18: #{linear_regression_v2.1} parent=0 // pred_check
    _
  $region19: #{linear_regression_v2.1} parent=0 // pred_check_branch
    %27 = sbr.rel (0) target = $region21
  $region20: #{linear_regression_v2.1} parent=0 // pred_region
    _
  $region21: #{linear_regression_v2.1} parent=0 // pred_fallthru
    _

</llo_original>
